<compile_context>
chip_gen: v5e
topology: v5e:2x2
jax: 0.10.0
libtpu: 0.0.40
codegen_flags: <defaults>
</compile_context>

<pallas_src>
import functools

import jax
import jax.numpy as jnp
import numpy as np
from jax.experimental import pallas as pl
from jax.experimental.pallas import tpu as pltpu

_PAD = 128  # halo width on each side of the flattened map (lane-tile aligned)


# --------------------------------------------------------------------------- #
# Pallas kernel: one batch element per grid step.
# --------------------------------------------------------------------------- #
def _ss_kernel(c, h, w, xpan_ref, xms_ref, wk_ref, b_ref, mask_ref,
               out_ref, p_pad_ref):
    f32 = jnp.float32
    hw = h * w

    xpan = xpan_ref[0]                       # (c, hw)  lane-dense
    xms = xms_ref[0]                         # (c, hw)
    p = xpan + xms                           # (c, hw)

    # Zero the halo (taps multiply halo lanes by 0-masks; uninitialized VMEM
    # could hold NaN bit patterns and 0*NaN would poison the result), then do
    # one lane-aligned, unmasked interior store of p.
    p_pad_ref[:, pl.ds(0, _PAD)] = jnp.zeros((c, _PAD), f32)
    p_pad_ref[:, pl.ds(_PAD + hw, _PAD)] = jnp.zeros((c, _PAD), f32)
    p_pad_ref[:, pl.ds(_PAD, hw)] = p

    # 3x3 conv as 9 accumulated MXU matmuls over shifted flattened maps.
    acc = jnp.zeros((c, hw), f32)
    for k in range(9):
        sy, sx = k // 3 - 1, k % 3 - 1
        shift = sy * w + sx                              # static Python int
        win = p_pad_ref[:, pl.ds(_PAD + shift, hw)]      # (c, hw)
        win = win * mask_ref[k]                          # kill row/col wrap
        acc = acc + jnp.dot(wk_ref[k], win, preferred_element_type=f32)

    p_joint = acc + b_ref[...]                           # (c,1) broadcast add
    p2 = jax.nn.sigmoid(p_joint)
    out_ref[0] = (1.0 - p2) * xms + p2 * xpan


# --------------------------------------------------------------------------- #
# Wrapper: layout plumbing (flatten spatial, reorder weights, constant masks)
# and the pallas_call.
# --------------------------------------------------------------------------- #
def ss_forward_pallas(xpan, xms, params):
    assert xpan.shape == xms.shape
    nb, c, h, w = xms.shape
    hw = h * w
    assert w + 1 <= _PAD, "halo too small for this width"

    # Layout plumbing only: flatten spatial so the lane axis is h*w.
    xpan_f = xpan.reshape(nb, c, hw).astype(jnp.float32)
    xms_f = xms.reshape(nb, c, hw).astype(jnp.float32)

    # Conv weight (c_out, c_in, 3, 3) -> (9, c_out, c_in), k = dy*3 + dx.
    wk = jnp.transpose(params['w_joint'], (2, 3, 0, 1)).reshape(9, c, c)
    wk = wk.astype(jnp.float32)
    b_col = params['b_joint'].reshape(c, 1).astype(jnp.float32)

    # Compile-time {0,1} masks that zero taps wrapping across row/col borders.
    ys, xs = np.divmod(np.arange(hw, dtype=np.int64), w)
    masks = np.empty((9, 1, hw), dtype=np.float32)
    for k in range(9):
        sy, sx = k // 3 - 1, k % 3 - 1
        valid = ((ys + sy >= 0) & (ys + sy < h) &
                 (xs + sx >= 0) & (xs + sx < w))
        masks[k, 0, :] = valid.astype(np.float32)
    masks = jnp.asarray(masks)

    kernel = functools.partial(_ss_kernel, c, h, w)

    out_flat = pl.pallas_call(
        kernel,
        out_shape=jax.ShapeDtypeStruct((nb, c, hw), jnp.float32),
        grid=(nb,),
        in_specs=[
            pl.BlockSpec((1, c, hw), lambda b: (b, 0, 0)),   # xpan (per batch)
            pl.BlockSpec((1, c, hw), lambda b: (b, 0, 0)),   # xms  (per batch)
            pl.BlockSpec((9, c, c), lambda b: (0, 0, 0)),    # conv weight
            pl.BlockSpec((c, 1), lambda b: (0, 0)),          # conv bias
            pl.BlockSpec((9, 1, hw), lambda b: (0, 0, 0)),   # tap masks
        ],
        out_specs=pl.BlockSpec((1, c, hw), lambda b: (b, 0, 0)),
        scratch_shapes=[pltpu.VMEM((c, hw + 2 * _PAD), jnp.float32)],
        compiler_params=pltpu.CompilerParams(
            dimension_semantics=("parallel",)),
    )(xpan_f, xms_f, wk, b_col, masks)

    return out_flat.reshape(nb, c, h, w)


# --------------------------------------------------------------------------- #
# Deterministic parameter init (shapes follow SSModule.__init__, channels=c).
# --------------------------------------------------------------------------- #
def init_params(key, c):
    k1, k2 = jax.random.split(key)
    return {
        'w_joint': (0.2 * jax.random.normal(k1, (c, c, 3, 3))).astype(jnp.float32),
        'b_joint': (0.1 * jax.random.normal(k2, (c,))).astype(jnp.float32),
    }


# --------------------------------------------------------------------------- #
# Pure-JAX reference (mirrors the PyTorch forward) for correctness check.
# --------------------------------------------------------------------------- #
def ss_forward_ref(xpan, xms, params):
    p = xpan + xms
    p_joint = jax.lax.conv_general_dilated(
        p, params['w_joint'], window_strides=(1, 1),
        padding=((1, 1), (1, 1)),
        dimension_numbers=('NCHW', 'OIHW', 'NCHW'),
        precision=jax.lax.Precision.HIGHEST)
    p_joint = p_joint + params['b_joint'][None, :, None, None]
    p2 = jax.nn.sigmoid(p_joint)
    return (1.0 - p2) * xms + p2 * xpan


# --------------------------------------------------------------------------- #
if __name__ == "__main__":
    key = jax.random.PRNGKey(0)
    nb, c, h, w = 2, 4, 16, 16
    k_pan, k_ms, k_p = jax.random.split(key, 3)
    xpan = jax.random.normal(k_pan, (nb, c, h, w), jnp.float32)
    xms = jax.random.normal(k_ms, (nb, c, h, w), jnp.float32)
    params = init_params(k_p, c)

    out = ss_forward_pallas(xpan, xms, params)
    jax.block_until_ready(out)

    ref = ss_forward_ref(xpan, xms, params)
    np.testing.assert_allclose(np.asarray(out), np.asarray(ref),
                               rtol=5e-3, atol=5e-4)
    print("KERNEL_OK")
</pallas_src>

<mosaic_0001>
module attributes {stable_mosaic.version = 11 : i64} {
  func.func @_ss_kernel(%arg0: i32, %arg1: memref<1x4x256xf32, #tpu.memory_space<vmem>>, %arg2: memref<1x4x256xf32, #tpu.memory_space<vmem>>, %arg3: memref<9x4x4xf32, #tpu.memory_space<vmem>>, %arg4: memref<4x1xf32, #tpu.memory_space<vmem>>, %arg5: memref<9x1x256xf32, #tpu.memory_space<vmem>>, %arg6: memref<1x4x256xf32, #tpu.memory_space<vmem>>, %arg7: memref<4x512xf32, #tpu.memory_space<vmem>>) attributes {dimension_semantics = [#tpu.dimension_semantics<parallel>], iteration_bounds = array<i64: 2>, scalar_prefetch = 0 : i64, scratch_operands = 1 : i64, tpu.core_type = #tpu.core_type<tc>, window_params = [{transform_indices = @transform_0, window_bounds = array<i64: 1, 4, 256>}, {transform_indices = @transform_1, window_bounds = array<i64: 1, 4, 256>}, {pipeline_mode = #tpu.pipeline_mode<synchronous>, transform_indices = @transform_2, window_bounds = array<i64: 9, 4, 4>}, {pipeline_mode = #tpu.pipeline_mode<synchronous>, transform_indices = @transform_3, window_bounds = array<i64: 4, 1>}, {pipeline_mode = #tpu.pipeline_mode<synchronous>, transform_indices = @transform_4, window_bounds = array<i64: 9, 1, 256>}, {transform_indices = @transform_5, window_bounds = array<i64: 1, 4, 256>}]} {
    %c0 = arith.constant 0 : index
    %c0_0 = arith.constant 0 : index
    %c0_1 = arith.constant 0 : index
    %0 = vector.load %arg1[%c0, %c0_0, %c0_1] : memref<1x4x256xf32, #tpu.memory_space<vmem>>, vector<1x4x256xf32>
    %1 = vector.shape_cast %0 : vector<1x4x256xf32> to vector<4x256xf32>
    %c0_2 = arith.constant 0 : index
    %c0_3 = arith.constant 0 : index
    %c0_4 = arith.constant 0 : index
    %2 = vector.load %arg2[%c0_2, %c0_3, %c0_4] : memref<1x4x256xf32, #tpu.memory_space<vmem>>, vector<1x4x256xf32>
    %3 = vector.shape_cast %2 : vector<1x4x256xf32> to vector<4x256xf32>
    %4 = arith.addf %1, %3 : vector<4x256xf32>
    %cst = arith.constant 0.000000e+00 : f32
    %5 = vector.broadcast %cst : f32 to vector<4x128xf32>
    %c0_5 = arith.constant 0 : index
    %c0_6 = arith.constant 0 : index
    %6 = vector.load %arg7[%c0_5, %c0_6] : memref<4x512xf32, #tpu.memory_space<vmem>>, vector<4x128xf32>
    tpu.vector_store %arg7[%c0_5, %c0_6], %5 {strides = array<i32>} : memref<4x512xf32, #tpu.memory_space<vmem>>, vector<4x128xf32>,
    %cst_7 = arith.constant 0.000000e+00 : f32
    %7 = vector.broadcast %cst_7 : f32 to vector<4x128xf32>
    %c0_8 = arith.constant 0 : index
    %c384 = arith.constant 384 : index
    %8 = vector.load %arg7[%c0_8, %c384] : memref<4x512xf32, #tpu.memory_space<vmem>>, vector<4x128xf32>
    tpu.vector_store %arg7[%c0_8, %c384], %7 {strides = array<i32>} : memref<4x512xf32, #tpu.memory_space<vmem>>, vector<4x128xf32>,
    %c0_9 = arith.constant 0 : index
    %c128 = arith.constant 128 : index
    %9 = vector.load %arg7[%c0_9, %c128] : memref<4x512xf32, #tpu.memory_space<vmem>>, vector<4x256xf32>
    tpu.vector_store %arg7[%c0_9, %c128], %4 {strides = array<i32>} : memref<4x512xf32, #tpu.memory_space<vmem>>, vector<4x256xf32>,
    %cst_10 = arith.constant 0.000000e+00 : f32
    %10 = vector.broadcast %cst_10 : f32 to vector<4x256xf32>
    %c0_11 = arith.constant 0 : index
    %c111 = arith.constant 111 : index
    %11 = vector.load %arg7[%c0_11, %c111] : memref<4x512xf32, #tpu.memory_space<vmem>>, vector<4x256xf32>
    %c0_12 = arith.constant 0 : index
    %c0_13 = arith.constant 0 : index
    %c0_14 = arith.constant 0 : index
    %12 = vector.load %arg5[%c0_12, %c0_13, %c0_14] : memref<9x1x256xf32, #tpu.memory_space<vmem>>, vector<1x1x256xf32>
    %13 = vector.shape_cast %12 : vector<1x1x256xf32> to vector<1x256xf32>
    %14 = vector.broadcast %13 : vector<1x256xf32> to vector<4x256xf32>
    %15 = arith.mulf %11, %14 : vector<4x256xf32>
    %c0_15 = arith.constant 0 : index
    %c0_16 = arith.constant 0 : index
    %c0_17 = arith.constant 0 : index
    %16 = vector.load %arg3[%c0_15, %c0_16, %c0_17] : memref<9x4x4xf32, #tpu.memory_space<vmem>>, vector<1x4x4xf32>
    %17 = vector.shape_cast %16 : vector<1x4x4xf32> to vector<4x4xf32>
    %cst_18 = arith.constant dense<0.000000e+00> : vector<4x256xf32>
    %18 = tpu.matmul %17, %15, %cst_18 {dimension_numbers = #tpu.dot_dimension_numbers<[1], [0], [0], [1], [0, 0, 1, 1], [], []>} : vector<4x4xf32>, vector<4x256xf32>, vector<4x256xf32> -> vector<4x256xf32>
    %19 = arith.addf %10, %18 : vector<4x256xf32>
    %c0_19 = arith.constant 0 : index
    %c112 = arith.constant 112 : index
    %20 = vector.load %arg7[%c0_19, %c112] : memref<4x512xf32, #tpu.memory_space<vmem>>, vector<4x256xf32>
    %c1 = arith.constant 1 : index
    %c0_20 = arith.constant 0 : index
    %c0_21 = arith.constant 0 : index
    %21 = vector.load %arg5[%c1, %c0_20, %c0_21] : memref<9x1x256xf32, #tpu.memory_space<vmem>>, vector<1x1x256xf32>
    %22 = vector.shape_cast %21 : vector<1x1x256xf32> to vector<1x256xf32>
    %23 = vector.broadcast %22 : vector<1x256xf32> to vector<4x256xf32>
    %24 = arith.mulf %20, %23 : vector<4x256xf32>
    %c1_22 = arith.constant 1 : index
    %c0_23 = arith.constant 0 : index
    %c0_24 = arith.constant 0 : index
    %25 = vector.load %arg3[%c1_22, %c0_23, %c0_24] : memref<9x4x4xf32, #tpu.memory_space<vmem>>, vector<1x4x4xf32>
    %26 = vector.shape_cast %25 : vector<1x4x4xf32> to vector<4x4xf32>
    %cst_25 = arith.constant dense<0.000000e+00> : vector<4x256xf32>
    %27 = tpu.matmul %26, %24, %cst_25 {dimension_numbers = #tpu.dot_dimension_numbers<[1], [0], [0], [1], [0, 0, 1, 1], [], []>} : vector<4x4xf32>, vector<4x256xf32>, vector<4x256xf32> -> vector<4x256xf32>
    %28 = arith.addf %19, %27 : vector<4x256xf32>
    %c0_26 = arith.constant 0 : index
    %c113 = arith.constant 113 : index
    %29 = vector.load %arg7[%c0_26, %c113] : memref<4x512xf32, #tpu.memory_space<vmem>>, vector<4x256xf32>
    %c2 = arith.constant 2 : index
    %c0_27 = arith.constant 0 : index
    %c0_28 = arith.constant 0 : index
    %30 = vector.load %arg5[%c2, %c0_27, %c0_28] : memref<9x1x256xf32, #tpu.memory_space<vmem>>, vector<1x1x256xf32>
    %31 = vector.shape_cast %30 : vector<1x1x256xf32> to vector<1x256xf32>
    %32 = vector.broadcast %31 : vector<1x256xf32> to vector<4x256xf32>
    %33 = arith.mulf %29, %32 : vector<4x256xf32>
    %c2_29 = arith.constant 2 : index
    %c0_30 = arith.constant 0 : index
    %c0_31 = arith.constant 0 : index
    %34 = vector.load %arg3[%c2_29, %c0_30, %c0_31] : memref<9x4x4xf32, #tpu.memory_space<vmem>>, vector<1x4x4xf32>
    %35 = vector.shape_cast %34 : vector<1x4x4xf32> to vector<4x4xf32>
    %cst_32 = arith.constant dense<0.000000e+00> : vector<4x256xf32>
    %36 = tpu.matmul %35, %33, %cst_32 {dimension_numbers = #tpu.dot_dimension_numbers<[1], [0], [0], [1], [0, 0, 1, 1], [], []>} : vector<4x4xf32>, vector<4x256xf32>, vector<4x256xf32> -> vector<4x256xf32>
    %37 = arith.addf %28, %36 : vector<4x256xf32>
    %c0_33 = arith.constant 0 : index
    %c127 = arith.constant 127 : index
    %38 = vector.load %arg7[%c0_33, %c127] : memref<4x512xf32, #tpu.memory_space<vmem>>, vector<4x256xf32>
    %c3 = arith.constant 3 : index
    %c0_34 = arith.constant 0 : index
    %c0_35 = arith.constant 0 : index
    %39 = vector.load %arg5[%c3, %c0_34, %c0_35] : memref<9x1x256xf32, #tpu.memory_space<vmem>>, vector<1x1x256xf32>
    %40 = vector.shape_cast %39 : vector<1x1x256xf32> to vector<1x256xf32>
    %41 = vector.broadcast %40 : vector<1x256xf32> to vector<4x256xf32>
    %42 = arith.mulf %38, %41 : vector<4x256xf32>
    %c3_36 = arith.constant 3 : index
    %c0_37 = arith.constant 0 : index
    %c0_38 = arith.constant 0 : index
    %43 = vector.load %arg3[%c3_36, %c0_37, %c0_38] : memref<9x4x4xf32, #tpu.memory_space<vmem>>, vector<1x4x4xf32>
    %44 = vector.shape_cast %43 : vector<1x4x4xf32> to vector<4x4xf32>
    %cst_39 = arith.constant dense<0.000000e+00> : vector<4x256xf32>
    %45 = tpu.matmul %44, %42, %cst_39 {dimension_numbers = #tpu.dot_dimension_numbers<[1], [0], [0], [1], [0, 0, 1, 1], [], []>} : vector<4x4xf32>, vector<4x256xf32>, vector<4x256xf32> -> vector<4x256xf32>
    %46 = arith.addf %37, %45 : vector<4x256xf32>
    %c0_40 = arith.constant 0 : index
    %c128_41 = arith.constant 128 : index
    %47 = vector.load %arg7[%c0_40, %c128_41] : memref<4x512xf32, #tpu.memory_space<vmem>>, vector<4x256xf32>
    %c4 = arith.constant 4 : index
    %c0_42 = arith.constant 0 : index
    %c0_43 = arith.constant 0 : index
    %48 = vector.load %arg5[%c4, %c0_42, %c0_43] : memref<9x1x256xf32, #tpu.memory_space<vmem>>, vector<1x1x256xf32>
    %49 = vector.shape_cast %48 : vector<1x1x256xf32> to vector<1x256xf32>
    %50 = vector.broadcast %49 : vector<1x256xf32> to vector<4x256xf32>
    %51 = arith.mulf %47, %50 : vector<4x256xf32>
    %c4_44 = arith.constant 4 : index
    %c0_45 = arith.constant 0 : index
    %c0_46 = arith.constant 0 : index
    %52 = vector.load %arg3[%c4_44, %c0_45, %c0_46] : memref<9x4x4xf32, #tpu.memory_space<vmem>>, vector<1x4x4xf32>
    %53 = vector.shape_cast %52 : vector<1x4x4xf32> to vector<4x4xf32>
    %cst_47 = arith.constant dense<0.000000e+00> : vector<4x256xf32>
    %54 = tpu.matmul %53, %51, %cst_47 {dimension_numbers = #tpu.dot_dimension_numbers<[1], [0], [0], [1], [0, 0, 1, 1], [], []>} : vector<4x4xf32>, vector<4x256xf32>, vector<4x256xf32> -> vector<4x256xf32>
    %55 = arith.addf %46, %54 : vector<4x256xf32>
    %c0_48 = arith.constant 0 : index
    %c129 = arith.constant 129 : index
    %56 = vector.load %arg7[%c0_48, %c129] : memref<4x512xf32, #tpu.memory_space<vmem>>, vector<4x256xf32>
    %c5 = arith.constant 5 : index
    %c0_49 = arith.constant 0 : index
    %c0_50 = arith.constant 0 : index
    %57 = vector.load %arg5[%c5, %c0_49, %c0_50] : memref<9x1x256xf32, #tpu.memory_space<vmem>>, vector<1x1x256xf32>
    %58 = vector.shape_cast %57 : vector<1x1x256xf32> to vector<1x256xf32>
    %59 = vector.broadcast %58 : vector<1x256xf32> to vector<4x256xf32>
    %60 = arith.mulf %56, %59 : vector<4x256xf32>
    %c5_51 = arith.constant 5 : index
    %c0_52 = arith.constant 0 : index
    %c0_53 = arith.constant 0 : index
    %61 = vector.load %arg3[%c5_51, %c0_52, %c0_53] : memref<9x4x4xf32, #tpu.memory_space<vmem>>, vector<1x4x4xf32>
    %62 = vector.shape_cast %61 : vector<1x4x4xf32> to vector<4x4xf32>
    %cst_54 = arith.constant dense<0.000000e+00> : vector<4x256xf32>
    %63 = tpu.matmul %62, %60, %cst_54 {dimension_numbers = #tpu.dot_dimension_numbers<[1], [0], [0], [1], [0, 0, 1, 1], [], []>} : vector<4x4xf32>, vector<4x256xf32>, vector<4x256xf32> -> vector<4x256xf32>
    %64 = arith.addf %55, %63 : vector<4x256xf32>
    %c0_55 = arith.constant 0 : index
    %c143 = arith.constant 143 : index
    %65 = vector.load %arg7[%c0_55, %c143] : memref<4x512xf32, #tpu.memory_space<vmem>>, vector<4x256xf32>
    %c6 = arith.constant 6 : index
    %c0_56 = arith.constant 0 : index
    %c0_57 = arith.constant 0 : index
    %66 = vector.load %arg5[%c6, %c0_56, %c0_57] : memref<9x1x256xf32, #tpu.memory_space<vmem>>, vector<1x1x256xf32>
    %67 = vector.shape_cast %66 : vector<1x1x256xf32> to vector<1x256xf32>
    %68 = vector.broadcast %67 : vector<1x256xf32> to vector<4x256xf32>
    %69 = arith.mulf %65, %68 : vector<4x256xf32>
    %c6_58 = arith.constant 6 : index
    %c0_59 = arith.constant 0 : index
    %c0_60 = arith.constant 0 : index
    %70 = vector.load %arg3[%c6_58, %c0_59, %c0_60] : memref<9x4x4xf32, #tpu.memory_space<vmem>>, vector<1x4x4xf32>
    %71 = vector.shape_cast %70 : vector<1x4x4xf32> to vector<4x4xf32>
    %cst_61 = arith.constant dense<0.000000e+00> : vector<4x256xf32>
    %72 = tpu.matmul %71, %69, %cst_61 {dimension_numbers = #tpu.dot_dimension_numbers<[1], [0], [0], [1], [0, 0, 1, 1], [], []>} : vector<4x4xf32>, vector<4x256xf32>, vector<4x256xf32> -> vector<4x256xf32>
    %73 = arith.addf %64, %72 : vector<4x256xf32>
    %c0_62 = arith.constant 0 : index
    %c144 = arith.constant 144 : index
    %74 = vector.load %arg7[%c0_62, %c144] : memref<4x512xf32, #tpu.memory_space<vmem>>, vector<4x256xf32>
    %c7 = arith.constant 7 : index
    %c0_63 = arith.constant 0 : index
    %c0_64 = arith.constant 0 : index
    %75 = vector.load %arg5[%c7, %c0_63, %c0_64] : memref<9x1x256xf32, #tpu.memory_space<vmem>>, vector<1x1x256xf32>
    %76 = vector.shape_cast %75 : vector<1x1x256xf32> to vector<1x256xf32>
    %77 = vector.broadcast %76 : vector<1x256xf32> to vector<4x256xf32>
    %78 = arith.mulf %74, %77 : vector<4x256xf32>
    %c7_65 = arith.constant 7 : index
    %c0_66 = arith.constant 0 : index
    %c0_67 = arith.constant 0 : index
    %79 = vector.load %arg3[%c7_65, %c0_66, %c0_67] : memref<9x4x4xf32, #tpu.memory_space<vmem>>, vector<1x4x4xf32>
    %80 = vector.shape_cast %79 : vector<1x4x4xf32> to vector<4x4xf32>
    %cst_68 = arith.constant dense<0.000000e+00> : vector<4x256xf32>
    %81 = tpu.matmul %80, %78, %cst_68 {dimension_numbers = #tpu.dot_dimension_numbers<[1], [0], [0], [1], [0, 0, 1, 1], [], []>} : vector<4x4xf32>, vector<4x256xf32>, vector<4x256xf32> -> vector<4x256xf32>
    %82 = arith.addf %73, %81 : vector<4x256xf32>
    %c0_69 = arith.constant 0 : index
    %c145 = arith.constant 145 : index
    %83 = vector.load %arg7[%c0_69, %c145] : memref<4x512xf32, #tpu.memory_space<vmem>>, vector<4x256xf32>
    %c8 = arith.constant 8 : index
    %c0_70 = arith.constant 0 : index
    %c0_71 = arith.constant 0 : index
    %84 = vector.load %arg5[%c8, %c0_70, %c0_71] : memref<9x1x256xf32, #tpu.memory_space<vmem>>, vector<1x1x256xf32>
    %85 = vector.shape_cast %84 : vector<1x1x256xf32> to vector<1x256xf32>
    %86 = vector.broadcast %85 : vector<1x256xf32> to vector<4x256xf32>
    %87 = arith.mulf %83, %86 : vector<4x256xf32>
    %c8_72 = arith.constant 8 : index
    %c0_73 = arith.constant 0 : index
    %c0_74 = arith.constant 0 : index
    %88 = vector.load %arg3[%c8_72, %c0_73, %c0_74] : memref<9x4x4xf32, #tpu.memory_space<vmem>>, vector<1x4x4xf32>
    %89 = vector.shape_cast %88 : vector<1x4x4xf32> to vector<4x4xf32>
    %cst_75 = arith.constant dense<0.000000e+00> : vector<4x256xf32>
    %90 = tpu.matmul %89, %87, %cst_75 {dimension_numbers = #tpu.dot_dimension_numbers<[1], [0], [0], [1], [0, 0, 1, 1], [], []>} : vector<4x4xf32>, vector<4x256xf32>, vector<4x256xf32> -> vector<4x256xf32>
    %91 = arith.addf %82, %90 : vector<4x256xf32>
    %c0_76 = arith.constant 0 : index
    %c0_77 = arith.constant 0 : index
    %92 = vector.load %arg4[%c0_76, %c0_77] : memref<4x1xf32, #tpu.memory_space<vmem>>, vector<4x1xf32>
    %93 = vector.broadcast %92 : vector<4x1xf32> to vector<4x256xf32>
    %94 = arith.addf %91, %93 : vector<4x256xf32>
    %95 = arith.negf %94 : vector<4x256xf32>
    %96 = math.exp %95 : vector<4x256xf32>
    %cst_78 = arith.constant 1.000000e+00 : f32
    %97 = vector.broadcast %cst_78 : f32 to vector<4x256xf32>
    %98 = arith.addf %97, %96 : vector<4x256xf32>
    %99 = arith.divf %97, %98 : vector<4x256xf32>
    %cst_79 = arith.constant 1.000000e+00 : f32
    %100 = vector.broadcast %cst_79 : f32 to vector<4x256xf32>
    %101 = arith.subf %100, %99 : vector<4x256xf32>
    %102 = arith.mulf %101, %3 : vector<4x256xf32>
    %103 = arith.mulf %99, %1 : vector<4x256xf32>
    %104 = arith.addf %102, %103 : vector<4x256xf32>
    %c0_80 = arith.constant 0 : index
    %c0_81 = arith.constant 0 : index
    %c0_82 = arith.constant 0 : index
    %105 = vector.load %arg6[%c0_80, %c0_81, %c0_82] : memref<1x4x256xf32, #tpu.memory_space<vmem>>, vector<1x4x256xf32>
    %106 = vector.shape_cast %105 : vector<1x4x256xf32> to vector<4x256xf32>
    %107 = vector.shape_cast %104 : vector<4x256xf32> to vector<1x4x256xf32>
    tpu.vector_store %arg6[%c0_80, %c0_81, %c0_82], %107 {strides = array<i32>} : memref<1x4x256xf32, #tpu.memory_space<vmem>>, vector<1x4x256xf32>,
    return
  }
  func.func @transform_0(%arg0: i32) -> (i32, i32, i32) {
    %c0_i32 = arith.constant 0 : i32
    %c0_i32_0 = arith.constant 0 : i32
    %c0_i32_1 = arith.constant 0 : i32
    return %arg0, %c0_i32, %c0_i32_0 : i32, i32, i32
  }
  func.func @transform_1(%arg0: i32) -> (i32, i32, i32) {
    %c0_i32 = arith.constant 0 : i32
    %c0_i32_0 = arith.constant 0 : i32
    %c0_i32_1 = arith.constant 0 : i32
    return %arg0, %c0_i32, %c0_i32_0 : i32, i32, i32
  }
  func.func @transform_2(%arg0: i32) -> (i32, i32, i32) {
    %c0_i32 = arith.constant 0 : i32
    %c0_i32_0 = arith.constant 0 : i32
    %c0_i32_1 = arith.constant 0 : i32
    %c0_i32_2 = arith.constant 0 : i32
    return %c0_i32, %c0_i32_0, %c0_i32_1 : i32, i32, i32
  }
  func.func @transform_3(%arg0: i32) -> (i32, i32) {
    %c0_i32 = arith.constant 0 : i32
    %c0_i32_0 = arith.constant 0 : i32
    %c0_i32_1 = arith.constant 0 : i32
    return %c0_i32, %c0_i32_0 : i32, i32
  }
  func.func @transform_4(%arg0: i32) -> (i32, i32, i32) {
    %c0_i32 = arith.constant 0 : i32
    %c0_i32_0 = arith.constant 0 : i32
    %c0_i32_1 = arith.constant 0 : i32
    %c0_i32_2 = arith.constant 0 : i32
    return %c0_i32, %c0_i32_0, %c0_i32_1 : i32, i32, i32
  }
  func.func @transform_5(%arg0: i32) -> (i32, i32, i32) {
    %c0_i32 = arith.constant 0 : i32
    %c0_i32_0 = arith.constant 0 : i32
    %c0_i32_1 = arith.constant 0 : i32
    return %arg0, %c0_i32, %c0_i32_0 : i32, i32, i32
  }
}

</mosaic_0001>

<llo_original>
// kernel: tpu_custom_call.1
$region0: #{tpu_custom_call.1}
  #allocation0 [shape = 'u32[]', space=smem, size = 0x4, offset = 0x4, fixed_abs, tag = 'smem constant byte address 0x4 - core index']
  #allocation1 [shape = 'u32[72,128]{1,0:T(1,128)}', space=vmem, size = 0x9000, scoped, tag = 'internal scratch']
  #allocation2 [shape = 'f32[4,512]{1,0:T(4,128)}', space=vmem, size = 0x2000, scoped, tag = 'scratch operand']
  %s0 = inlined_call_operand.vmem [shape: f32[2,4,256], index: 0, kind: input, shape index: {}]
  %s1 = inlined_call_operand.vmem [shape: f32[2,4,256], index: 1, kind: input, shape index: {}]
  %s2 = inlined_call_operand.vmem [shape: f32[9,4,4], index: 2, kind: input, shape index: {}]
  %s3 = inlined_call_operand.vmem [shape: f32[4,1], index: 3, kind: input, shape index: {}]
  %s4 = inlined_call_operand.vmem [shape: f32[9,1,256], index: 4, kind: input, shape index: {}]
  %s5 = inlined_call_operand.hbm [shape: f32[2,4,256], index: 5, kind: output, shape index: {}]
  %s6 = sld [smem:[#allocation0]]
  $region53: #{tpu_custom_call.1} parent=0
    _
  %s8 = ssub.s32 1, %s6
  %s9 = scalar_select 0, %s8, %s6
  $region1: #{tpu_custom_call.1} parent=0
    #allocation3 [shape = 'u8[8192]{0}', space=vmem, size = 0x2000, scoped, tag = 'output window, operand 0']
    #allocation4 [shape = 's32[2]{0}', space=sflag, size = 0x8, scoped, tag = 'scoped memory for tpu_custom_call.1']
    %10 = vsyncpa [#allocation4], 0
    %s11 = scalar_lea.sflag [#allocation4], 1
    %12 = vsyncpa %s11, 0
    loop: start=0, step=1, limit=4
    $region2: #{tpu_custom_call.1} parent=1 // loop_pre_header
      _
    $region3: #{tpu_custom_call.1} parent=1 // loop_header
      %s14 = sphi 0, %s18
      %p15 = scmp.ge.s32.totalorder %s14, 4
      %s24 = sphi 0, %s26
      %s27 = sphi 0, %s24
      %s28 = sphi 0, %s27
      %s44 = sphi 0, %s28
      %s50 = sphi 0, %s52
      %s53 = sphi 0, %s50
      %s54 = sphi 0, %s53
      %s70 = sphi 0, %s54
      %s74 = sphi 0, %s74
      %s76 = sphi 0, %s74
      %s77 = sphi 0, %s76
      %s91 = sphi 0, %s77
      %s95 = sphi 0, %s95
      %s97 = sphi 0, %s95
      %s98 = sphi 0, %s97
      %s112 = sphi 0, %s98
      %s116 = sphi 0, %s116
      %s118 = sphi 0, %s116
      %s119 = sphi 0, %s118
      %s133 = sphi 0, %s119
      %s139 = sphi 0, %s141
      %s142 = sphi 0, %s139
      %s143 = sphi 0, %s142
      %s159 = sphi 0, %s143
    $region4: #{tpu_custom_call.1} parent=1 // loop_header_branch
      %17 = sbr.rel (%p15) target = $region8
    $region5: #{tpu_custom_call.1} parent=1 // loop_body
      %s19 = ssub.s32 %s14, 1
      %s20 = ssub.s32 %s14, 2
      %s21 = sadd.s32 %s14, 1
      %s22 = ssub.s32 %s14, %s21
      %p23 = scmp.eq.s32.totalorder %s22, 0
      %s25 = sadd.s32 %s24, 1
      %s26 = scalar_select %p23, %s24, %s25
      %p29 = pneg %p23
      %p30 = scmp.eq.s32.totalorder %s14, 1
      %p31 = por %p29, %p30
      %p32 = scmp.ne.s32.totalorder %s24, %s27
      %p33 = scmp.eq.s32.totalorder %s14, 0
      %p34 = por %p32, %p33
      %p35 = scmp.ne.s32.totalorder %s24, %s27
      %p36 = scmp.eq.s32.totalorder %s19, 1
      %p37 = por %p35, %p36
      %p38 = scmp.ne.s32.totalorder %s27, %s28
      %p39 = scmp.eq.s32.totalorder %s19, 0
      %p40 = por %p38, %p39
      %p41 = scmp.ne.s32.totalorder %s27, %s28
      %p42 = scmp.eq.s32.totalorder %s20, 1
      %p43 = por %p41, %p42
      %p45 = scmp.ne.s32.totalorder %s28, %s44
      %p46 = scmp.eq.s32.totalorder %s20, 0
      %p47 = por %p45, %p46
      %s48 = ssub.s32 %s14, %s21
      %p49 = scmp.eq.s32.totalorder %s48, 0
      %s51 = sadd.s32 %s50, 1
      %s52 = scalar_select %p49, %s50, %s51
      %p55 = pneg %p49
      %p56 = scmp.eq.s32.totalorder %s14, 1
      %p57 = por %p55, %p56
      %p58 = scmp.ne.s32.totalorder %s50, %s53
      %p59 = scmp.eq.s32.totalorder %s14, 0
      %p60 = por %p58, %p59
      %p61 = scmp.ne.s32.totalorder %s50, %s53
      %p62 = scmp.eq.s32.totalorder %s19, 1
      %p63 = por %p61, %p62
      %p64 = scmp.ne.s32.totalorder %s53, %s54
      %p65 = scmp.eq.s32.totalorder %s19, 0
      %p66 = por %p64, %p65
      %p67 = scmp.ne.s32.totalorder %s53, %s54
      %p68 = scmp.eq.s32.totalorder %s20, 1
      %p69 = por %p67, %p68
      %p71 = scmp.ne.s32.totalorder %s54, %s70
      %p72 = scmp.eq.s32.totalorder %s20, 0
      %p73 = por %p71, %p72
      %s75 = sadd.s32 %s74, 1
      %p78 = scmp.eq.s32.totalorder %s14, 1
      %p79 = scmp.ne.s32.totalorder %s74, %s76
      %p80 = scmp.eq.s32.totalorder %s14, 0
      %p81 = por %p79, %p80
      %p82 = scmp.ne.s32.totalorder %s74, %s76
      %p83 = scmp.eq.s32.totalorder %s19, 1
      %p84 = por %p82, %p83
      %p85 = scmp.ne.s32.totalorder %s76, %s77
      %p86 = scmp.eq.s32.totalorder %s19, 0
      %p87 = por %p85, %p86
      %p88 = scmp.ne.s32.totalorder %s76, %s77
      %p89 = scmp.eq.s32.totalorder %s20, 1
      %p90 = por %p88, %p89
      %p92 = scmp.ne.s32.totalorder %s77, %s91
      %p93 = scmp.eq.s32.totalorder %s20, 0
      %p94 = por %p92, %p93
      %s96 = sadd.s32 %s95, 1
      %p99 = scmp.eq.s32.totalorder %s14, 1
      %p100 = scmp.ne.s32.totalorder %s95, %s97
      %p101 = scmp.eq.s32.totalorder %s14, 0
      %p102 = por %p100, %p101
      %p103 = scmp.ne.s32.totalorder %s95, %s97
      %p104 = scmp.eq.s32.totalorder %s19, 1
      %p105 = por %p103, %p104
      %p106 = scmp.ne.s32.totalorder %s97, %s98
      %p107 = scmp.eq.s32.totalorder %s19, 0
      %p108 = por %p106, %p107
      %p109 = scmp.ne.s32.totalorder %s97, %s98
      %p110 = scmp.eq.s32.totalorder %s20, 1
      %p111 = por %p109, %p110
      %p113 = scmp.ne.s32.totalorder %s98, %s112
      %p114 = scmp.eq.s32.totalorder %s20, 0
      %p115 = por %p113, %p114
      %s117 = sadd.s32 %s116, 1
      %p120 = scmp.eq.s32.totalorder %s14, 1
      %p121 = scmp.ne.s32.totalorder %s116, %s118
      %p122 = scmp.eq.s32.totalorder %s14, 0
      %p123 = por %p121, %p122
      %p124 = scmp.ne.s32.totalorder %s116, %s118
      %p125 = scmp.eq.s32.totalorder %s19, 1
      %p126 = por %p124, %p125
      %p127 = scmp.ne.s32.totalorder %s118, %s119
      %p128 = scmp.eq.s32.totalorder %s19, 0
      %p129 = por %p127, %p128
      %p130 = scmp.ne.s32.totalorder %s118, %s119
      %p131 = scmp.eq.s32.totalorder %s20, 1
      %p132 = por %p130, %p131
      %p134 = scmp.ne.s32.totalorder %s119, %s133
      %p135 = scmp.eq.s32.totalorder %s20, 0
      %p136 = por %p134, %p135
      %s137 = ssub.s32 %s14, %s21
      %p138 = scmp.eq.s32.totalorder %s137, 0
      %s140 = sadd.s32 %s139, 1
      %s141 = scalar_select %p138, %s139, %s140
      %p144 = pneg %p138
      %p145 = scmp.eq.s32.totalorder %s14, 1
      %p146 = por %p144, %p145
      %p147 = scmp.ne.s32.totalorder %s139, %s142
      %p148 = scmp.eq.s32.totalorder %s14, 0
      %p149 = por %p147, %p148
      %p150 = scmp.ne.s32.totalorder %s139, %s142
      %p151 = scmp.eq.s32.totalorder %s19, 1
      %p152 = por %p150, %p151
      %p153 = scmp.ne.s32.totalorder %s142, %s143
      %p154 = scmp.eq.s32.totalorder %s19, 0
      %p155 = por %p153, %p154
      %p156 = scmp.ne.s32.totalorder %s142, %s143
      %p157 = scmp.eq.s32.totalorder %s20, 1
      %p158 = por %p156, %p157
      %p160 = scmp.ne.s32.totalorder %s143, %s159
      %p161 = scmp.eq.s32.totalorder %s20, 0
      %p162 = por %p160, %p161
      %p163 = scmp.le.s32.totalorder 1, %s14
      %p164 = scmp.lt.s32.totalorder %s14, 3
      %p165 = pnand %p163, %p164
      %p166 = pneg %p165
      // Predicated region
      $region9: #{tpu_custom_call.1} parent=5 // pred_check
        _
      $region10: #{tpu_custom_call.1} parent=5 // pred_check_branch
        %168 = sbr.rel (%p165) target = $region12
      $region11: #{tpu_custom_call.1} parent=5 // pred_region
        %s169 = ssub.s32 %s14, 1
        // Predicated region
        $region13: #{tpu_custom_call.1} parent=11 // pred_check
          %p170 = pneg %p87
        $region14: #{tpu_custom_call.1} parent=11 // pred_check_branch
          %172 = sbr.rel (%p170) target = $region16
        $region15: #{tpu_custom_call.1} parent=11 // pred_region
          _
        $region16: #{tpu_custom_call.1} parent=11 // pred_fallthru
          _
        // Predicated region
        $region17: #{tpu_custom_call.1} parent=11 // pred_check
          %p173 = pneg %p108
        $region18: #{tpu_custom_call.1} parent=11 // pred_check_branch
          %175 = sbr.rel (%p173) target = $region20
        $region19: #{tpu_custom_call.1} parent=11 // pred_region
          _
        $region20: #{tpu_custom_call.1} parent=11 // pred_fallthru
          _
        // Predicated region
        $region21: #{tpu_custom_call.1} parent=11 // pred_check
          %p176 = pneg %p129
        $region22: #{tpu_custom_call.1} parent=11 // pred_check_branch
          %178 = sbr.rel (%p176) target = $region24
        $region23: #{tpu_custom_call.1} parent=11 // pred_region
          _
        $region24: #{tpu_custom_call.1} parent=11 // pred_fallthru
          _
      $region12: #{tpu_custom_call.1} parent=5 // pred_fallthru
        _
      %p179 = scmp.lt.s32.totalorder %s14, 2
      // Predicated region
      $region25: #{tpu_custom_call.1} parent=5 // pred_check
        %p180 = pneg %p179
      $region26: #{tpu_custom_call.1} parent=5 // pred_check_branch
        %182 = sbr.rel (%p180) target = $region28
      $region27: #{tpu_custom_call.1} parent=5 // pred_region
        // Predicated region
        $region29: #{tpu_custom_call.1} parent=27 // pred_check
          %p183 = pneg %p34
        $region30: #{tpu_custom_call.1} parent=27 // pred_check_branch
          %185 = sbr.rel (%p183) target = $region32
        $region31: #{tpu_custom_call.1} parent=27 // pred_region
          %p186 = scmp.lt.s32.totalorder %s14, 1
          %s187 = scalar_select %p186, %s14, 1
          %s188 = smul.addr %s187, 2
          %s189 = smul.addr %s188, 4
          %s190 = scalar_lea.vmem %s0, %s189
        $region32: #{tpu_custom_call.1} parent=27 // pred_fallthru
          _
        // Predicated region
        $region33: #{tpu_custom_call.1} parent=27 // pred_check
          %p191 = pneg %p60
        $region34: #{tpu_custom_call.1} parent=27 // pred_check_branch
          %193 = sbr.rel (%p191) target = $region36
        $region35: #{tpu_custom_call.1} parent=27 // pred_region
          %p194 = scmp.lt.s32.totalorder %s14, 1
          %s195 = scalar_select %p194, %s14, 1
          %s196 = smul.addr %s195, 2
          %s197 = smul.addr %s196, 4
          %s198 = scalar_lea.vmem %s1, %s197
        $region36: #{tpu_custom_call.1} parent=27 // pred_fallthru
          _
      $region28: #{tpu_custom_call.1} parent=5 // pred_fallthru
        _
      %p199 = scmp.le.s32.totalorder 1, %s14
      %p200 = scmp.lt.s32.totalorder %s14, 3
      %p201 = pnand %p199, %p200
      %p202 = pneg %p201
      // Predicated region
      $region37: #{tpu_custom_call.1} parent=5 // pred_check
        _
      $region38: #{tpu_custom_call.1} parent=5 // pred_check_branch
        %204 = sbr.rel (%p201) target = $region40
      $region39: #{tpu_custom_call.1} parent=5 // pred_region
        %s205 = ssub.s32 %s14, 1
        %p206 = scmp.lt.s32.totalorder %s19, 1
        %s207 = scalar_select %p206, %s19, 1
        %s208 = smul.addr %s207, 2
        %s209 = smul.addr %s208, 4
        %s210 = scalar_lea.vmem %s0, %s209
        %p211 = pneg %p40
        %p212 = pneg %p37
        %p213 = scmp.lt.s32.totalorder %s19, 1
        %s214 = scalar_select %p213, %s19, 1
        %s215 = smul.addr %s214, 2
        %s216 = smul.addr %s215, 4
        %s217 = scalar_lea.vmem %s1, %s216
        %p218 = pneg %p66
        %p219 = pneg %p63
        %p220 = pneg %p87
        %p221 = pneg %p84
        %p222 = pneg %p108
        %p223 = pneg %p105
        %p224 = pneg %p129
        %p225 = pneg %p126
        %p226 = pneg %p155
        %p227 = pneg %p152
        %s228 = sand.u32 %s142, 1
        %s229 = scalar_lea.sflag [#allocation4], %s228
        %s230 = sand.u32 %s142, 1
        %s231 = smul.addr %s230, 8
        %s232 = scalar_lea.vmem [#allocation3], %s231
        %p233 = scmp.lt.s32.totalorder %s19, 1
        %s234 = scalar_select %p233, %s19, 1
        %s235 = smul.addr %s234, 2
        %s236 = smul.addr %s235, 4
        %s237 = scalar_lea.vmem %s0, %s236
        %p238 = scmp.lt.s32.totalorder %s19, 1
        %s239 = scalar_select %p238, %s19, 1
        %s240 = smul.addr %s239, 2
        %s241 = smul.addr %s240, 4
        %s242 = scalar_lea.vmem %s1, %s241
        %v243 = vld [vmem:[%s237] sm:$0xff]
        %v244 = vld [vmem:[%s242] sm:$0xff]
        %v245 = vadd.f32 %v243, %v244
        %246 = vst [vmem:[#allocation2] sm:$0xf] 0.0
        %247 = vst [vmem:[#allocation2 + $0xc] sm:$0xf] 0.0
        %248 = vst [vmem:[#allocation2 + $0x4] sm:$0xff] %v245
        %v249 = vld [vmem:[#allocation2] sm:$0xff]
        %v250 = vld [vmem:[#allocation2 + $0x8] sm:$0xf]
        %v251 = vld [vmem:[%s4] sm:$0x3]
        %v253 = vperm.slane %v251, 0
        %v254 = vperm.slane %v251, 1
        %v255 = vrot.slane %v254, 4
        %vm256 = vcmask 1043456
        %v257 = vsel %vm256, %v253, %v255
        %258 = vrot.lane.b32.xlu0 %v257, 111
        %v259 = vpop.permute.xlu0 %258
        %v260 = vrot.slane %v259, 4
        %vm261 = vcmask 908288
        %v262 = vsel %vm261, %v260, %v259
        %v265 = vmul.f32 %v249, %v262
        %v266 = vmul.f32 %v250, %v260
        %v267 = vld [vmem:[%s2] sm:$0xf]
        %s268 = scalar_lea.vmem %s4, 2
        %v269 = vld [vmem:[%s268] sm:$0x3]
        %v271 = vperm.slane %v269, 0
        %v272 = vperm.slane %v269, 1
        %v273 = vrot.slane %v272, 4
        %v274 = vsel %vm256, %v271, %v273
        %275 = vrot.lane.b32.xlu0 %v274, 112
        %v276 = vpop.permute.xlu0 %275
        %v277 = vrot.slane %v276, 4
        %vm278 = vcmask 916480
        %v279 = vsel %vm278, %v277, %v276
        %v282 = vmul.f32 %v249, %v279
        %v283 = vmul.f32 %v250, %v277
        %s284 = scalar_lea.vmem %s2, 4
        %v285 = vld [vmem:[%s284] sm:$0xf]
        %288 = vst [vmem:[#allocation1] ss:$2 sm:$0xff] %v282
        %s289 = scalar_lea.vmem [#allocation1], 16
        %290 = vst [vmem:[%s289] ss:$2 sm:$0xff] %v283
        %v291 = vld.sshfl [vmem:[#allocation1] sm:$0xff pattern:$0x75316420]
        %v292 = vld.sshfl [vmem:[#allocation1 + $0x8] sm:$0xff pattern:$0x75316420]
        %v293 = vld.sshfl [vmem:[#allocation1 + $0x10] sm:$0xff pattern:$0x75316420]
        %294 = vrot.lane.b32.xlu0 %v291, 16
        %v295 = vpop.permute.xlu0 %294
        %296 = vrot.lane.b32.xlu0 %v292, 16
        %v297 = vpop.permute.xlu0 %296
        %298 = vrot.lane.b32.xlu0 %v293, 16
        %v299 = vpop.permute.xlu0 %298
        %vm300 = vcmask 130048
        %v301 = vsel %vm300, %v295, %v297
        %v302 = vsel %vm300, %v297, %v299
        %vm303 = vcmask 31744
        %v305 = vsel %vm303, %v285, 0
        %v307 = vsel %vm256, %v301, 0
        %v309 = vsel %vm256, %v302, 0
        %311 = vmatpush.msra.mxu0 0.0
        %312 = vmatpush.msra.mxu0 0.0
        %313 = vmatpush.msra.mxu0 0.0
        %314 = vmatpush.msra.mxu0 0.0
        %315 = vmatpush.msra.mxu0 0.0
        %316 = vmatpush.msra.mxu0 0.0
        %317 = vmatpush.msra.mxu0 0.0
        %318 = vmatpush.msra.mxu0 0.0
        %319 = vmatpush.msra.mxu0 0.0
        %320 = vmatpush.msra.mxu0 0.0
        %321 = vmatpush.msra.mxu0 0.0
        %322 = vmatpush.msra.mxu0 0.0
        %323 = vmatpush.msra.mxu0 0.0
        %324 = vmatpush.msra.mxu0 0.0
        %325 = vmatpush.msra.mxu0 0.0
        %326 = vmatpush.msra.mxu0 %v307
        %327 = vmatmul.f32.gmra.mxu0 %v305
        %v328 = vpop.f32.mrf.mxu0
        %v329 = vadd.f32 0.0, %v328
        %330 = vdwg.mxu0
        %331 = vmatpush.msra.mxu0 0.0
        %332 = vmatpush.msra.mxu0 0.0
        %333 = vmatpush.msra.mxu0 0.0
        %334 = vmatpush.msra.mxu0 0.0
        %335 = vmatpush.msra.mxu0 0.0
        %336 = vmatpush.msra.mxu0 0.0
        %337 = vmatpush.msra.mxu0 0.0
        %338 = vmatpush.msra.mxu0 0.0
        %339 = vmatpush.msra.mxu0 0.0
        %340 = vmatpush.msra.mxu0 0.0
        %341 = vmatpush.msra.mxu0 0.0
        %342 = vmatpush.msra.mxu0 0.0
        %343 = vmatpush.msra.mxu0 0.0
        %344 = vmatpush.msra.mxu0 0.0
        %345 = vmatpush.msra.mxu0 0.0
        %346 = vmatpush.msra.mxu0 %v309
        %347 = vmatmul.f32.gmra.mxu0 %v305
        %v348 = vpop.f32.mrf.mxu0
        %v349 = vadd.f32 0.0, %v348
        %350 = vdwg.mxu0
        %353 = vst [vmem:[#allocation1] ss:$2 sm:$0xff] %v265
        %s354 = scalar_lea.vmem [#allocation1], 16
        %355 = vst [vmem:[%s354] ss:$2 sm:$0xff] %v266
        %v356 = vld.sshfl [vmem:[#allocation1] sm:$0xff pattern:$0x75316420]
        %v357 = vld.sshfl [vmem:[#allocation1 + $0x8] sm:$0xff pattern:$0x75316420]
        %v358 = vld.sshfl [vmem:[#allocation1 + $0x10] sm:$0xff pattern:$0x75316420]
        %359 = vrot.lane.b32.xlu0 %v356, 17
        %v360 = vpop.permute.xlu0 %359
        %361 = vrot.lane.b32.xlu0 %v357, 17
        %v362 = vpop.permute.xlu0 %361
        %363 = vrot.lane.b32.xlu0 %v358, 17
        %v364 = vpop.permute.xlu0 %363
        %vm365 = vcmask 138240
        %v366 = vsel %vm365, %v360, %v362
        %v367 = vsel %vm365, %v362, %v364
        %v369 = vsel %vm303, %v267, 0
        %v371 = vsel %vm256, %v366, 0
        %v373 = vsel %vm256, %v367, 0
        %375 = vmatpush.msra.mxu0 0.0
        %376 = vmatpush.msra.mxu0 0.0
        %377 = vmatpush.msra.mxu0 0.0
        %378 = vmatpush.msra.mxu0 0.0
        %379 = vmatpush.msra.mxu0 0.0
        %380 = vmatpush.msra.mxu0 0.0
        %381 = vmatpush.msra.mxu0 0.0
        %382 = vmatpush.msra.mxu0 0.0
        %383 = vmatpush.msra.mxu0 0.0
        %384 = vmatpush.msra.mxu0 0.0
        %385 = vmatpush.msra.mxu0 0.0
        %386 = vmatpush.msra.mxu0 0.0
        %387 = vmatpush.msra.mxu0 0.0
        %388 = vmatpush.msra.mxu0 0.0
        %389 = vmatpush.msra.mxu0 0.0
        %390 = vmatpush.msra.mxu0 %v371
        %391 = vmatmul.f32.gmra.mxu0 %v369
        %v392 = vpop.f32.mrf.mxu0
        %v393 = vadd.f32 %v329, %v392
        %394 = vdwg.mxu0
        %395 = vmatpush.msra.mxu0 0.0
        %396 = vmatpush.msra.mxu0 0.0
        %397 = vmatpush.msra.mxu0 0.0
        %398 = vmatpush.msra.mxu0 0.0
        %399 = vmatpush.msra.mxu0 0.0
        %400 = vmatpush.msra.mxu0 0.0
        %401 = vmatpush.msra.mxu0 0.0
        %402 = vmatpush.msra.mxu0 0.0
        %403 = vmatpush.msra.mxu0 0.0
        %404 = vmatpush.msra.mxu0 0.0
        %405 = vmatpush.msra.mxu0 0.0
        %406 = vmatpush.msra.mxu0 0.0
        %407 = vmatpush.msra.mxu0 0.0
        %408 = vmatpush.msra.mxu0 0.0
        %409 = vmatpush.msra.mxu0 0.0
        %410 = vmatpush.msra.mxu0 %v373
        %411 = vmatmul.f32.gmra.mxu0 %v369
        %v412 = vpop.f32.mrf.mxu0
        %v413 = vadd.f32 %v349, %v412
        %414 = vdwg.mxu0
        %v415 = vld [vmem:[#allocation2] sm:$0xff]
        %v416 = vld [vmem:[#allocation2 + $0x8] sm:$0xf]
        %s417 = scalar_lea.vmem %s4, 4
        %v418 = vld [vmem:[%s417] sm:$0x3]
        %v420 = vperm.slane %v418, 0
        %v421 = vperm.slane %v418, 1
        %v422 = vrot.slane %v421, 4
        %v423 = vsel %vm256, %v420, %v422
        %424 = vrot.lane.b32.xlu0 %v423, 113
        %v425 = vpop.permute.xlu0 %424
        %v426 = vrot.slane %v425, 4
        %vm427 = vcmask 924672
        %v428 = vsel %vm427, %v426, %v425
        %v431 = vmul.f32 %v415, %v428
        %v432 = vmul.f32 %v416, %v426
        %s433 = scalar_lea.vmem %s2, 8
        %v434 = vld [vmem:[%s433] sm:$0xf]
        %437 = vst [vmem:[#allocation1] ss:$2 sm:$0xff] %v431
        %s438 = scalar_lea.vmem [#allocation1], 16
        %439 = vst [vmem:[%s438] ss:$2 sm:$0xff] %v432
        %v440 = vld.sshfl [vmem:[#allocation1] sm:$0xff pattern:$0x75316420]
        %v441 = vld.sshfl [vmem:[#allocation1 + $0x8] sm:$0xff pattern:$0x75316420]
        %v442 = vld.sshfl [vmem:[#allocation1 + $0x10] sm:$0xff pattern:$0x75316420]
        %443 = vrot.lane.b32.xlu0 %v440, 15
        %v444 = vpop.permute.xlu0 %443
        %445 = vrot.lane.b32.xlu0 %v441, 15
        %v446 = vpop.permute.xlu0 %445
        %447 = vrot.lane.b32.xlu0 %v442, 15
        %v448 = vpop.permute.xlu0 %447
        %vm449 = vcmask 121856
        %v450 = vsel %vm449, %v444, %v446
        %v451 = vsel %vm449, %v446, %v448
        %v453 = vsel %vm303, %v434, 0
        %v455 = vsel %vm256, %v450, 0
        %v457 = vsel %vm256, %v451, 0
        %459 = vmatpush.msra.mxu0 0.0
        %460 = vmatpush.msra.mxu0 0.0
        %461 = vmatpush.msra.mxu0 0.0
        %462 = vmatpush.msra.mxu0 0.0
        %463 = vmatpush.msra.mxu0 0.0
        %464 = vmatpush.msra.mxu0 0.0
        %465 = vmatpush.msra.mxu0 0.0
        %466 = vmatpush.msra.mxu0 0.0
        %467 = vmatpush.msra.mxu0 0.0
        %468 = vmatpush.msra.mxu0 0.0
        %469 = vmatpush.msra.mxu0 0.0
        %470 = vmatpush.msra.mxu0 0.0
        %471 = vmatpush.msra.mxu0 0.0
        %472 = vmatpush.msra.mxu0 0.0
        %473 = vmatpush.msra.mxu0 0.0
        %474 = vmatpush.msra.mxu0 %v455
        %475 = vmatmul.f32.gmra.mxu0 %v453
        %v476 = vpop.f32.mrf.mxu0
        %v477 = vadd.f32 0.0, %v476
        %478 = vdwg.mxu0
        %479 = vmatpush.msra.mxu0 0.0
        %480 = vmatpush.msra.mxu0 0.0
        %481 = vmatpush.msra.mxu0 0.0
        %482 = vmatpush.msra.mxu0 0.0
        %483 = vmatpush.msra.mxu0 0.0
        %484 = vmatpush.msra.mxu0 0.0
        %485 = vmatpush.msra.mxu0 0.0
        %486 = vmatpush.msra.mxu0 0.0
        %487 = vmatpush.msra.mxu0 0.0
        %488 = vmatpush.msra.mxu0 0.0
        %489 = vmatpush.msra.mxu0 0.0
        %490 = vmatpush.msra.mxu0 0.0
        %491 = vmatpush.msra.mxu0 0.0
        %492 = vmatpush.msra.mxu0 0.0
        %493 = vmatpush.msra.mxu0 0.0
        %494 = vmatpush.msra.mxu0 %v457
        %495 = vmatmul.f32.gmra.mxu0 %v453
        %v496 = vpop.f32.mrf.mxu0
        %v497 = vadd.f32 0.0, %v496
        %498 = vdwg.mxu0
        %v499 = vadd.f32 %v393, %v477
        %v500 = vadd.f32 %v413, %v497
        %v501 = vld [vmem:[#allocation2] sm:$0xff]
        %v502 = vld [vmem:[#allocation2 + $0x8] sm:$0xf]
        %s503 = scalar_lea.vmem %s4, 6
        %v504 = vld [vmem:[%s503] sm:$0x3]
        %v506 = vperm.slane %v504, 0
        %v507 = vperm.slane %v504, 1
        %v508 = vrot.slane %v507, 4
        %v509 = vsel %vm256, %v506, %v508
        %510 = vrot.lane.b32.xlu0 %v509, 127
        %v511 = vpop.permute.xlu0 %510
        %v512 = vrot.slane %v511, 4
        %vm513 = vcmask 1039360
        %v514 = vsel %vm513, %v512, %v511
        %v517 = vmul.f32 %v501, %v514
        %v518 = vmul.f32 %v502, %v512
        %s519 = scalar_lea.vmem %s2, 12
        %v520 = vld [vmem:[%s519] sm:$0xf]
        %523 = vst [vmem:[#allocation1] ss:$2 sm:$0xff] %v517
        %s524 = scalar_lea.vmem [#allocation1], 16
        %525 = vst [vmem:[%s524] ss:$2 sm:$0xff] %v518
        %v526 = vld.sshfl [vmem:[#allocation1] sm:$0xff pattern:$0x75316420]
        %v527 = vld.sshfl [vmem:[#allocation1 + $0x8] sm:$0xff pattern:$0x75316420]
        %v528 = vld.sshfl [vmem:[#allocation1 + $0x10] sm:$0xff pattern:$0x75316420]
        %529 = vrot.lane.b32.xlu0 %v526, 1
        %v530 = vpop.permute.xlu0 %529
        %531 = vrot.lane.b32.xlu0 %v527, 1
        %v532 = vpop.permute.xlu0 %531
        %533 = vrot.lane.b32.xlu0 %v528, 1
        %v534 = vpop.permute.xlu0 %533
        %vm535 = vcmask 7168
        %v536 = vsel %vm535, %v530, %v532
        %v537 = vsel %vm535, %v532, %v534
        %v539 = vsel %vm303, %v520, 0
        %v541 = vsel %vm256, %v536, 0
        %v543 = vsel %vm256, %v537, 0
        %545 = vmatpush.msra.mxu0 0.0
        %546 = vmatpush.msra.mxu0 0.0
        %547 = vmatpush.msra.mxu0 0.0
        %548 = vmatpush.msra.mxu0 0.0
        %549 = vmatpush.msra.mxu0 0.0
        %550 = vmatpush.msra.mxu0 0.0
        %551 = vmatpush.msra.mxu0 0.0
        %552 = vmatpush.msra.mxu0 0.0
        %553 = vmatpush.msra.mxu0 0.0
        %554 = vmatpush.msra.mxu0 0.0
        %555 = vmatpush.msra.mxu0 0.0
        %556 = vmatpush.msra.mxu0 0.0
        %557 = vmatpush.msra.mxu0 0.0
        %558 = vmatpush.msra.mxu0 0.0
        %559 = vmatpush.msra.mxu0 0.0
        %560 = vmatpush.msra.mxu0 %v541
        %561 = vmatmul.f32.gmra.mxu0 %v539
        %v562 = vpop.f32.mrf.mxu0
        %v563 = vadd.f32 0.0, %v562
        %564 = vdwg.mxu0
        %565 = vmatpush.msra.mxu0 0.0
        %566 = vmatpush.msra.mxu0 0.0
        %567 = vmatpush.msra.mxu0 0.0
        %568 = vmatpush.msra.mxu0 0.0
        %569 = vmatpush.msra.mxu0 0.0
        %570 = vmatpush.msra.mxu0 0.0
        %571 = vmatpush.msra.mxu0 0.0
        %572 = vmatpush.msra.mxu0 0.0
        %573 = vmatpush.msra.mxu0 0.0
        %574 = vmatpush.msra.mxu0 0.0
        %575 = vmatpush.msra.mxu0 0.0
        %576 = vmatpush.msra.mxu0 0.0
        %577 = vmatpush.msra.mxu0 0.0
        %578 = vmatpush.msra.mxu0 0.0
        %579 = vmatpush.msra.mxu0 0.0
        %580 = vmatpush.msra.mxu0 %v543
        %581 = vmatmul.f32.gmra.mxu0 %v539
        %v582 = vpop.f32.mrf.mxu0
        %v583 = vadd.f32 0.0, %v582
        %584 = vdwg.mxu0
        %v585 = vadd.f32 %v499, %v563
        %v586 = vadd.f32 %v500, %v583
        %v587 = vld [vmem:[#allocation2 + $0x4] sm:$0xff]
        %s588 = scalar_lea.vmem %s4, 8
        %v589 = vld [vmem:[%s588] sm:$0x3]
        %v591 = vperm.slane %v589, 0
        %v592 = vperm.slane %v589, 1
        %v593 = vrot.slane %v592, 4
        %v594 = vsel %vm256, %v591, %v593
        %v596 = vmul.f32 %v587, %v594
        %s597 = scalar_lea.vmem %s2, 16
        %v598 = vld [vmem:[%s597] sm:$0xf]
        %600 = vst [vmem:[#allocation1] ss:$2 sm:$0xff] %v596
        %v601 = vld.sshfl [vmem:[#allocation1] sm:$0xff pattern:$0x75316420]
        %v602 = vld.sshfl [vmem:[#allocation1 + $0x8] sm:$0xff pattern:$0x75316420]
        %v604 = vsel %vm303, %v598, 0
        %v606 = vsel %vm256, %v601, 0
        %v608 = vsel %vm256, %v602, 0
        %610 = vmatpush.msra.mxu0 0.0
        %611 = vmatpush.msra.mxu0 0.0
        %612 = vmatpush.msra.mxu0 0.0
        %613 = vmatpush.msra.mxu0 0.0
        %614 = vmatpush.msra.mxu0 0.0
        %615 = vmatpush.msra.mxu0 0.0
        %616 = vmatpush.msra.mxu0 0.0
        %617 = vmatpush.msra.mxu0 0.0
        %618 = vmatpush.msra.mxu0 0.0
        %619 = vmatpush.msra.mxu0 0.0
        %620 = vmatpush.msra.mxu0 0.0
        %621 = vmatpush.msra.mxu0 0.0
        %622 = vmatpush.msra.mxu0 0.0
        %623 = vmatpush.msra.mxu0 0.0
        %624 = vmatpush.msra.mxu0 0.0
        %625 = vmatpush.msra.mxu0 %v606
        %626 = vmatmul.f32.gmra.mxu0 %v604
        %v627 = vpop.f32.mrf.mxu0
        %v628 = vadd.f32 0.0, %v627
        %629 = vdwg.mxu0
        %630 = vmatpush.msra.mxu0 0.0
        %631 = vmatpush.msra.mxu0 0.0
        %632 = vmatpush.msra.mxu0 0.0
        %633 = vmatpush.msra.mxu0 0.0
        %634 = vmatpush.msra.mxu0 0.0
        %635 = vmatpush.msra.mxu0 0.0
        %636 = vmatpush.msra.mxu0 0.0
        %637 = vmatpush.msra.mxu0 0.0
        %638 = vmatpush.msra.mxu0 0.0
        %639 = vmatpush.msra.mxu0 0.0
        %640 = vmatpush.msra.mxu0 0.0
        %641 = vmatpush.msra.mxu0 0.0
        %642 = vmatpush.msra.mxu0 0.0
        %643 = vmatpush.msra.mxu0 0.0
        %644 = vmatpush.msra.mxu0 0.0
        %645 = vmatpush.msra.mxu0 %v608
        %646 = vmatmul.f32.gmra.mxu0 %v604
        %v647 = vpop.f32.mrf.mxu0
        %v648 = vadd.f32 0.0, %v647
        %649 = vdwg.mxu0
        %v650 = vadd.f32 %v585, %v628
        %v651 = vadd.f32 %v586, %v648
        %v652 = vld [vmem:[#allocation2 + $0x4] sm:$0xff]
        %v653 = vld [vmem:[#allocation2 + $0xc] sm:$0xf]
        %s654 = scalar_lea.vmem %s4, 10
        %v655 = vld [vmem:[%s654] sm:$0x3]
        %v657 = vperm.slane %v655, 0
        %v658 = vperm.slane %v655, 1
        %v659 = vrot.slane %v658, 4
        %v660 = vsel %vm256, %v657, %v659
        %661 = vrot.lane.b32.xlu0 %v660, 1
        %v662 = vpop.permute.xlu0 %661
        %v663 = vrot.slane %v662, 4
        %v664 = vsel %vm535, %v663, %v662
        %v667 = vmul.f32 %v652, %v664
        %v668 = vmul.f32 %v653, %v663
        %s669 = scalar_lea.vmem %s2, 20
        %v670 = vld [vmem:[%s669] sm:$0xf]
        %673 = vst [vmem:[#allocation1] ss:$2 sm:$0xff] %v667
        %s674 = scalar_lea.vmem [#allocation1], 16
        %675 = vst [vmem:[%s674] ss:$2 sm:$0xff] %v668
        %v676 = vld.sshfl [vmem:[#allocation1] sm:$0xff pattern:$0x75316420]
        %v677 = vld.sshfl [vmem:[#allocation1 + $0x8] sm:$0xff pattern:$0x75316420]
        %v678 = vld.sshfl [vmem:[#allocation1 + $0x10] sm:$0xff pattern:$0x75316420]
        %679 = vrot.lane.b32.xlu0 %v676, 127
        %v680 = vpop.permute.xlu0 %679
        %681 = vrot.lane.b32.xlu0 %v677, 127
        %v682 = vpop.permute.xlu0 %681
        %683 = vrot.lane.b32.xlu0 %v678, 127
        %v684 = vpop.permute.xlu0 %683
        %v685 = vsel %vm513, %v680, %v682
        %v686 = vsel %vm513, %v682, %v684
        %v688 = vsel %vm303, %v670, 0
        %v690 = vsel %vm256, %v685, 0
        %v692 = vsel %vm256, %v686, 0
        %694 = vmatpush.msra.mxu0 0.0
        %695 = vmatpush.msra.mxu0 0.0
        %696 = vmatpush.msra.mxu0 0.0
        %697 = vmatpush.msra.mxu0 0.0
        %698 = vmatpush.msra.mxu0 0.0
        %699 = vmatpush.msra.mxu0 0.0
        %700 = vmatpush.msra.mxu0 0.0
        %701 = vmatpush.msra.mxu0 0.0
        %702 = vmatpush.msra.mxu0 0.0
        %703 = vmatpush.msra.mxu0 0.0
        %704 = vmatpush.msra.mxu0 0.0
        %705 = vmatpush.msra.mxu0 0.0
        %706 = vmatpush.msra.mxu0 0.0
        %707 = vmatpush.msra.mxu0 0.0
        %708 = vmatpush.msra.mxu0 0.0
        %709 = vmatpush.msra.mxu0 %v690
        %710 = vmatmul.f32.gmra.mxu0 %v688
        %v711 = vpop.f32.mrf.mxu0
        %v712 = vadd.f32 0.0, %v711
        %713 = vdwg.mxu0
        %714 = vmatpush.msra.mxu0 0.0
        %715 = vmatpush.msra.mxu0 0.0
        %716 = vmatpush.msra.mxu0 0.0
        %717 = vmatpush.msra.mxu0 0.0
        %718 = vmatpush.msra.mxu0 0.0
        %719 = vmatpush.msra.mxu0 0.0
        %720 = vmatpush.msra.mxu0 0.0
        %721 = vmatpush.msra.mxu0 0.0
        %722 = vmatpush.msra.mxu0 0.0
        %723 = vmatpush.msra.mxu0 0.0
        %724 = vmatpush.msra.mxu0 0.0
        %725 = vmatpush.msra.mxu0 0.0
        %726 = vmatpush.msra.mxu0 0.0
        %727 = vmatpush.msra.mxu0 0.0
        %728 = vmatpush.msra.mxu0 0.0
        %729 = vmatpush.msra.mxu0 %v692
        %730 = vmatmul.f32.gmra.mxu0 %v688
        %v731 = vpop.f32.mrf.mxu0
        %v732 = vadd.f32 0.0, %v731
        %733 = vdwg.mxu0
        %v734 = vadd.f32 %v650, %v712
        %v735 = vadd.f32 %v651, %v732
        %v736 = vld [vmem:[#allocation2 + $0x4] sm:$0xff]
        %v737 = vld [vmem:[#allocation2 + $0xc] sm:$0xf]
        %s738 = scalar_lea.vmem %s4, 12
        %v739 = vld [vmem:[%s738] sm:$0x3]
        %v741 = vperm.slane %v739, 0
        %v742 = vperm.slane %v739, 1
        %v743 = vrot.slane %v742, 4
        %v744 = vsel %vm256, %v741, %v743
        %745 = vrot.lane.b32.xlu0 %v744, 15
        %v746 = vpop.permute.xlu0 %745
        %v747 = vrot.slane %v746, 4
        %v748 = vsel %vm449, %v747, %v746
        %v751 = vmul.f32 %v736, %v748
        %v752 = vmul.f32 %v737, %v747
        %s753 = scalar_lea.vmem %s2, 24
        %v754 = vld [vmem:[%s753] sm:$0xf]
        %757 = vst [vmem:[#allocation1] ss:$2 sm:$0xff] %v751
        %s758 = scalar_lea.vmem [#allocation1], 16
        %759 = vst [vmem:[%s758] ss:$2 sm:$0xff] %v752
        %v760 = vld.sshfl [vmem:[#allocation1] sm:$0xff pattern:$0x75316420]
        %v761 = vld.sshfl [vmem:[#allocation1 + $0x8] sm:$0xff pattern:$0x75316420]
        %v762 = vld.sshfl [vmem:[#allocation1 + $0x10] sm:$0xff pattern:$0x75316420]
        %763 = vrot.lane.b32.xlu0 %v760, 113
        %v764 = vpop.permute.xlu0 %763
        %765 = vrot.lane.b32.xlu0 %v761, 113
        %v766 = vpop.permute.xlu0 %765
        %767 = vrot.lane.b32.xlu0 %v762, 113
        %v768 = vpop.permute.xlu0 %767
        %v769 = vsel %vm427, %v764, %v766
        %v770 = vsel %vm427, %v766, %v768
        %v772 = vsel %vm303, %v754, 0
        %v774 = vsel %vm256, %v769, 0
        %v776 = vsel %vm256, %v770, 0
        %778 = vmatpush.msra.mxu0 0.0
        %779 = vmatpush.msra.mxu0 0.0
        %780 = vmatpush.msra.mxu0 0.0
        %781 = vmatpush.msra.mxu0 0.0
        %782 = vmatpush.msra.mxu0 0.0
        %783 = vmatpush.msra.mxu0 0.0
        %784 = vmatpush.msra.mxu0 0.0
        %785 = vmatpush.msra.mxu0 0.0
        %786 = vmatpush.msra.mxu0 0.0
        %787 = vmatpush.msra.mxu0 0.0
        %788 = vmatpush.msra.mxu0 0.0
        %789 = vmatpush.msra.mxu0 0.0
        %790 = vmatpush.msra.mxu0 0.0
        %791 = vmatpush.msra.mxu0 0.0
        %792 = vmatpush.msra.mxu0 0.0
        %793 = vmatpush.msra.mxu0 %v774
        %794 = vmatmul.f32.gmra.mxu0 %v772
        %v795 = vpop.f32.mrf.mxu0
        %v796 = vadd.f32 0.0, %v795
        %797 = vdwg.mxu0
        %798 = vmatpush.msra.mxu0 0.0
        %799 = vmatpush.msra.mxu0 0.0
        %800 = vmatpush.msra.mxu0 0.0
        %801 = vmatpush.msra.mxu0 0.0
        %802 = vmatpush.msra.mxu0 0.0
        %803 = vmatpush.msra.mxu0 0.0
        %804 = vmatpush.msra.mxu0 0.0
        %805 = vmatpush.msra.mxu0 0.0
        %806 = vmatpush.msra.mxu0 0.0
        %807 = vmatpush.msra.mxu0 0.0
        %808 = vmatpush.msra.mxu0 0.0
        %809 = vmatpush.msra.mxu0 0.0
        %810 = vmatpush.msra.mxu0 0.0
        %811 = vmatpush.msra.mxu0 0.0
        %812 = vmatpush.msra.mxu0 0.0
        %813 = vmatpush.msra.mxu0 %v776
        %814 = vmatmul.f32.gmra.mxu0 %v772
        %v815 = vpop.f32.mrf.mxu0
        %v816 = vadd.f32 0.0, %v815
        %817 = vdwg.mxu0
        %v818 = vadd.f32 %v734, %v796
        %v819 = vadd.f32 %v735, %v816
        %v820 = vld [vmem:[#allocation2 + $0x4] sm:$0xff]
        %v821 = vld [vmem:[#allocation2 + $0xc] sm:$0xf]
        %s822 = scalar_lea.vmem %s4, 14
        %v823 = vld [vmem:[%s822] sm:$0x3]
        %v825 = vperm.slane %v823, 0
        %v826 = vperm.slane %v823, 1
        %v827 = vrot.slane %v826, 4
        %v828 = vsel %vm256, %v825, %v827
        %829 = vrot.lane.b32.xlu0 %v828, 16
        %v830 = vpop.permute.xlu0 %829
        %v831 = vrot.slane %v830, 4
        %v832 = vsel %vm300, %v831, %v830
        %v835 = vmul.f32 %v820, %v832
        %v836 = vmul.f32 %v821, %v831
        %s837 = scalar_lea.vmem %s2, 28
        %v838 = vld [vmem:[%s837] sm:$0xf]
        %841 = vst [vmem:[#allocation1] ss:$2 sm:$0xff] %v835
        %s842 = scalar_lea.vmem [#allocation1], 16
        %843 = vst [vmem:[%s842] ss:$2 sm:$0xff] %v836
        %v844 = vld.sshfl [vmem:[#allocation1] sm:$0xff pattern:$0x75316420]
        %v845 = vld.sshfl [vmem:[#allocation1 + $0x8] sm:$0xff pattern:$0x75316420]
        %v846 = vld.sshfl [vmem:[#allocation1 + $0x10] sm:$0xff pattern:$0x75316420]
        %847 = vrot.lane.b32.xlu0 %v844, 112
        %v848 = vpop.permute.xlu0 %847
        %849 = vrot.lane.b32.xlu0 %v845, 112
        %v850 = vpop.permute.xlu0 %849
        %851 = vrot.lane.b32.xlu0 %v846, 112
        %v852 = vpop.permute.xlu0 %851
        %v853 = vsel %vm278, %v848, %v850
        %v854 = vsel %vm278, %v850, %v852
        %v856 = vsel %vm303, %v838, 0
        %v858 = vsel %vm256, %v853, 0
        %v860 = vsel %vm256, %v854, 0
        %862 = vmatpush.msra.mxu0 0.0
        %863 = vmatpush.msra.mxu0 0.0
        %864 = vmatpush.msra.mxu0 0.0
        %865 = vmatpush.msra.mxu0 0.0
        %866 = vmatpush.msra.mxu0 0.0
        %867 = vmatpush.msra.mxu0 0.0
        %868 = vmatpush.msra.mxu0 0.0
        %869 = vmatpush.msra.mxu0 0.0
        %870 = vmatpush.msra.mxu0 0.0
        %871 = vmatpush.msra.mxu0 0.0
        %872 = vmatpush.msra.mxu0 0.0
        %873 = vmatpush.msra.mxu0 0.0
        %874 = vmatpush.msra.mxu0 0.0
        %875 = vmatpush.msra.mxu0 0.0
        %876 = vmatpush.msra.mxu0 0.0
        %877 = vmatpush.msra.mxu0 %v858
        %878 = vmatmul.f32.gmra.mxu0 %v856
        %v879 = vpop.f32.mrf.mxu0
        %v880 = vadd.f32 0.0, %v879
        %881 = vdwg.mxu0
        %882 = vmatpush.msra.mxu0 0.0
        %883 = vmatpush.msra.mxu0 0.0
        %884 = vmatpush.msra.mxu0 0.0
        %885 = vmatpush.msra.mxu0 0.0
        %886 = vmatpush.msra.mxu0 0.0
        %887 = vmatpush.msra.mxu0 0.0
        %888 = vmatpush.msra.mxu0 0.0
        %889 = vmatpush.msra.mxu0 0.0
        %890 = vmatpush.msra.mxu0 0.0
        %891 = vmatpush.msra.mxu0 0.0
        %892 = vmatpush.msra.mxu0 0.0
        %893 = vmatpush.msra.mxu0 0.0
        %894 = vmatpush.msra.mxu0 0.0
        %895 = vmatpush.msra.mxu0 0.0
        %896 = vmatpush.msra.mxu0 0.0
        %897 = vmatpush.msra.mxu0 %v860
        %898 = vmatmul.f32.gmra.mxu0 %v856
        %v899 = vpop.f32.mrf.mxu0
        %v900 = vadd.f32 0.0, %v899
        %901 = vdwg.mxu0
        %v902 = vadd.f32 %v818, %v880
        %v903 = vadd.f32 %v819, %v900
        %v904 = vld [vmem:[#allocation2 + $0x4] sm:$0xff]
        %v905 = vld [vmem:[#allocation2 + $0xc] sm:$0xf]
        %s906 = scalar_lea.vmem %s4, 16
        %v907 = vld [vmem:[%s906] sm:$0x3]
        %v909 = vperm.slane %v907, 0
        %v910 = vperm.slane %v907, 1
        %v911 = vrot.slane %v910, 4
        %v912 = vsel %vm256, %v909, %v911
        %913 = vrot.lane.b32.xlu0 %v912, 17
        %v914 = vpop.permute.xlu0 %913
        %v915 = vrot.slane %v914, 4
        %v916 = vsel %vm365, %v915, %v914
        %v919 = vmul.f32 %v904, %v916
        %v920 = vmul.f32 %v905, %v915
        %s921 = scalar_lea.vmem %s2, 32
        %v922 = vld [vmem:[%s921] sm:$0xf]
        %925 = vst [vmem:[#allocation1] ss:$2 sm:$0xff] %v919
        %s926 = scalar_lea.vmem [#allocation1], 16
        %927 = vst [vmem:[%s926] ss:$2 sm:$0xff] %v920
        %v928 = vld.sshfl [vmem:[#allocation1] sm:$0xff pattern:$0x75316420]
        %v929 = vld.sshfl [vmem:[#allocation1 + $0x8] sm:$0xff pattern:$0x75316420]
        %v930 = vld.sshfl [vmem:[#allocation1 + $0x10] sm:$0xff pattern:$0x75316420]
        %931 = vrot.lane.b32.xlu0 %v928, 111
        %v932 = vpop.permute.xlu0 %931
        %933 = vrot.lane.b32.xlu0 %v929, 111
        %v934 = vpop.permute.xlu0 %933
        %935 = vrot.lane.b32.xlu0 %v930, 111
        %v936 = vpop.permute.xlu0 %935
        %v937 = vsel %vm261, %v932, %v934
        %v938 = vsel %vm261, %v934, %v936
        %v940 = vsel %vm303, %v922, 0
        %v942 = vsel %vm256, %v937, 0
        %v944 = vsel %vm256, %v938, 0
        %946 = vmatpush.msra.mxu0 0.0
        %947 = vmatpush.msra.mxu0 0.0
        %948 = vmatpush.msra.mxu0 0.0
        %949 = vmatpush.msra.mxu0 0.0
        %950 = vmatpush.msra.mxu0 0.0
        %951 = vmatpush.msra.mxu0 0.0
        %952 = vmatpush.msra.mxu0 0.0
        %953 = vmatpush.msra.mxu0 0.0
        %954 = vmatpush.msra.mxu0 0.0
        %955 = vmatpush.msra.mxu0 0.0
        %956 = vmatpush.msra.mxu0 0.0
        %957 = vmatpush.msra.mxu0 0.0
        %958 = vmatpush.msra.mxu0 0.0
        %959 = vmatpush.msra.mxu0 0.0
        %960 = vmatpush.msra.mxu0 0.0
        %961 = vmatpush.msra.mxu0 %v942
        %962 = vmatmul.f32.gmra.mxu0 %v940
        %v963 = vpop.f32.mrf.mxu0
        %v964 = vadd.f32 0.0, %v963
        %965 = vdwg.mxu0
        %966 = vmatpush.msra.mxu0 0.0
        %967 = vmatpush.msra.mxu0 0.0
        %968 = vmatpush.msra.mxu0 0.0
        %969 = vmatpush.msra.mxu0 0.0
        %970 = vmatpush.msra.mxu0 0.0
        %971 = vmatpush.msra.mxu0 0.0
        %972 = vmatpush.msra.mxu0 0.0
        %973 = vmatpush.msra.mxu0 0.0
        %974 = vmatpush.msra.mxu0 0.0
        %975 = vmatpush.msra.mxu0 0.0
        %976 = vmatpush.msra.mxu0 0.0
        %977 = vmatpush.msra.mxu0 0.0
        %978 = vmatpush.msra.mxu0 0.0
        %979 = vmatpush.msra.mxu0 0.0
        %980 = vmatpush.msra.mxu0 0.0
        %981 = vmatpush.msra.mxu0 %v944
        %982 = vmatmul.f32.gmra.mxu0 %v940
        %v983 = vpop.f32.mrf.mxu0
        %v984 = vadd.f32 0.0, %v983
        %985 = vdwg.mxu0
        %v986 = vadd.f32 %v902, %v964
        %v987 = vadd.f32 %v903, %v984
        %v988 = vld [vmem:[%s3] sm:$0xf]
        %990 = vset.pattern.permute.xlu0 0
        %991 = vperm.xlu0 %990, %v988
        %v992 = vpop.permute.xlu0 %991
        %v994 = vadd.f32 %v986, %v992
        %v995 = vadd.f32 %v987, %v992
        %v996 = vxor.u32 %v994, 2147483648
        %v997 = vxor.u32 %v995, 2147483648
        %v998 = vmul.f32 %v996, 1.442695
        %v999 = vpow.pop %v998
        %v1000 = vmul.f32 %v997, 1.442695
        %v1001 = vpow.pop %v1000
        %v1002 = vadd.f32 %v999, 1.0
        %v1003 = vadd.f32 %v1001, 1.0
        %v1004 = vrcp.pop %v1002
        %v1005 = vmul.f32 %v1002, %v1004
        %v1006 = vsub.f32 1.0, %v1005
        %v1007 = vmul.f32 %v1004, %v1006
        %v1008 = vadd.f32 %v1004, %v1007
        %vm1009 = vweird.f32 %v1002
        %vm1010 = vweird.f32 %v1004
        %vm1011 = vmor %vm1009, %vm1010
        %v1012 = vsel %vm1011, %v1004, %v1008
        %v1013 = vand.u32 2147483647, %v1002
        %vm1014 = vcmp.eq.f32.partialorder %v1013, 8.507059e+37
        %v1015 = vand.u32 %v1002, 2147483648
        %v1016 = vor.u32 1.1754944e-38, %v1015
        %v1017 = vsel %vm1014, %v1016, %v1012
        %v1018 = vmul.f32 1.0, %v1017
        %v1019 = vrcp.pop %v1003
        %v1020 = vmul.f32 %v1003, %v1019
        %v1021 = vsub.f32 1.0, %v1020
        %v1022 = vmul.f32 %v1019, %v1021
        %v1023 = vadd.f32 %v1019, %v1022
        %vm1024 = vweird.f32 %v1003
        %vm1025 = vweird.f32 %v1019
        %vm1026 = vmor %vm1024, %vm1025
        %v1027 = vsel %vm1026, %v1019, %v1023
        %v1028 = vand.u32 2147483647, %v1003
        %vm1029 = vcmp.eq.f32.partialorder %v1028, 8.507059e+37
        %v1030 = vand.u32 %v1003, 2147483648
        %v1031 = vor.u32 1.1754944e-38, %v1030
        %v1032 = vsel %vm1029, %v1031, %v1027
        %v1033 = vmul.f32 1.0, %v1032
        %v1034 = vsub.f32 1.0, %v1018
        %v1035 = vsub.f32 1.0, %v1033
        %1037 = vst [vmem:[#allocation1] ss:$2 sm:$0xff] %v244
        %v1038 = vld.sshfl [vmem:[#allocation1] sm:$0xff pattern:$0x75316420]
        %v1039 = vld.sshfl [vmem:[#allocation1 + $0x8] sm:$0xff pattern:$0x75316420]
        %v1042 = vmul.f32 %v1034, %v1038
        %v1043 = vmul.f32 %v1035, %v1039
        %1045 = vst [vmem:[#allocation1] ss:$2 sm:$0xff] %v243
        %v1046 = vld.sshfl [vmem:[#allocation1] sm:$0xff pattern:$0x75316420]
        %v1047 = vld.sshfl [vmem:[#allocation1 + $0x8] sm:$0xff pattern:$0x75316420]
        %v1050 = vmul.f32 %v1018, %v1046
        %v1051 = vmul.f32 %v1033, %v1047
        %v1052 = vadd.f32 %v1042, %v1050
        %v1053 = vadd.f32 %v1043, %v1051
        %v1056 = vrot.slane %v1053, 4
        %v1057 = vsel %vm256, %v1052, %v1056
        %1059 = vst [vmem:[%s232] sm:$0xff] %v1057
        %s1060 = sand.u32 %s142, 1
        %s1061 = scalar_lea.sflag [#allocation4], %s1060
        %s1062 = sand.u32 %s142, 1
        %s1063 = smul.addr %s1062, 8
        %s1064 = scalar_lea.vmem [#allocation3], %s1063
        // Predicated region
        $region41: #{tpu_custom_call.1} parent=39 // pred_check
          %p1065 = pneg %p152
        $region42: #{tpu_custom_call.1} parent=39 // pred_check_branch
          %1067 = sbr.rel (%p1065) target = $region44
        $region43: #{tpu_custom_call.1} parent=39 // pred_region
          %1069 = vsyncadd %s1061, 0
          %s1070 = smul.addr %s19, 2
          %s1071 = smul.addr %s1070, 4
          %s1072 = scalar_lea.hbm %s5, %s1071
          %s1074 = sshll.u32 %s1064, 4
          %s1075 = int_to_ptr.vmem [resolvable:$true] %s1074
          %s1076 = sshll.u32 %s1072, 4
          %s1077 = int_to_ptr.hbm [resolvable:$true] %s1076
          %1079 = dma.vmem_to_hbm [thread:$0]  %s1075, 128, %s1077, %s1061
        $region44: #{tpu_custom_call.1} parent=39 // pred_fallthru
          _
      $region40: #{tpu_custom_call.1} parent=5 // pred_fallthru
        _
      %p1080 = scmp.le.s32.totalorder 2, %s14
      // Predicated region
      $region45: #{tpu_custom_call.1} parent=5 // pred_check
        %p1081 = pneg %p1080
      $region46: #{tpu_custom_call.1} parent=5 // pred_check_branch
        %1083 = sbr.rel (%p1081) target = $region48
      $region47: #{tpu_custom_call.1} parent=5 // pred_region
        %s1084 = ssub.s32 %s14, 2
        // Predicated region
        $region49: #{tpu_custom_call.1} parent=47 // pred_check
          %p1085 = pneg %p158
        $region50: #{tpu_custom_call.1} parent=47 // pred_check_branch
          %1087 = sbr.rel (%p1085) target = $region52
        $region51: #{tpu_custom_call.1} parent=47 // pred_region
          %s1088 = sand.u32 %s143, 1
          %s1089 = scalar_lea.sflag [#allocation4], %s1088
          %s1090 = sand.u32 %s143, 1
          %s1091 = smul.addr %s1090, 8
          %s1092 = scalar_lea.vmem [#allocation3], %s1091
          %1094 = dma.done %s1089, 128
        $region52: #{tpu_custom_call.1} parent=47 // pred_fallthru
          _
      $region48: #{tpu_custom_call.1} parent=5 // pred_fallthru
        _
    $region6: #{tpu_custom_call.1} parent=1 // loop_footer
      %s18 = sadd.s32 1, %s14
    $region7: #{tpu_custom_call.1} parent=1 // loop_footer_branch
      %13 = sbr.rel target = $region3
    $region8: #{tpu_custom_call.1} parent=1 // loop_exit
      _
    %1095 = vsyncpa [#allocation4], 1
    %s1096 = scalar_lea.sflag [#allocation4], 1
    %1097 = vsyncpa %s1096, 1

</llo_original>
